<compile_context>
chip_gen: v5e
topology: v5e:2x2
jax: 0.10.0
libtpu: 0.0.40
codegen_flags: <defaults>
</compile_context>

<pallas_src>
import functools

import jax
import jax.numpy as jnp
from jax import lax
from jax.experimental import pallas as pl
from jax.experimental.pallas import tpu as pltpu

HEAD_PAD = 128  # lane-dense width of the fused head output slab


def _behavior_classifier_kernel(
    x_ref,                    # (TM, D)  bf16
    w1_ref, b1_ref,           # (D, F) bf16, (1, F) f32
    w2_ref, b2_ref,           # (F, D) bf16, (1, D) f32
    wh_ref, bh_ref,           # (D, 128) bf16, (1, 128) f32   fused [cls0|cls1|cls2|reg|pad]
    out_ref,                  # (TM, 128) f32
    *, dim_cls,
):
    C = dim_cls
    x = x_ref[...]

    # PositionwiseFeedForward: w_2(dropout(relu(w_1(x)))), dropout = identity.
    h = jnp.dot(x, w1_ref[...], preferred_element_type=jnp.float32) + b1_ref[...]
    h = jnp.maximum(h, 0.0)
    y = jnp.dot(h.astype(w2_ref.dtype), w2_ref[...],
                preferred_element_type=jnp.float32) + b2_ref[...]        # (TM, D) f32

    # Single fused head matmul -> lane-dense 128-wide logits slab.
    logits = jnp.dot(y.astype(wh_ref.dtype), wh_ref[...],
                     preferred_element_type=jnp.float32) + bh_ref[...]   # (TM, 128) f32

    # Segmented softmax over the three cls head lane-ranges; reg lanes pass through.
    lane = lax.broadcasted_iota(jnp.int32, (1, HEAD_PAD), 1)
    head_masks = [(lane >= j * C) & (lane < (j + 1) * C) for j in range(3)]
    cls_mask = lane < 3 * C
    neg = jnp.float32(-1e30)

    m_full = jnp.zeros_like(logits)
    for mk in head_masks:
        m_j = jnp.max(jnp.where(mk, logits, neg), axis=-1, keepdims=True)  # (TM, 1)
        m_full = jnp.where(mk, m_j, m_full)

    e = jnp.where(cls_mask, jnp.exp(logits - m_full), 0.0)

    denom = jnp.ones_like(logits)
    for mk in head_masks:
        s_j = jnp.sum(jnp.where(mk, e, 0.0), axis=-1, keepdims=True)       # (TM, 1)
        denom = jnp.where(mk, s_j, denom)

    probs = e * pl.reciprocal(denom, approx=True)
    out_ref[...] = jnp.where(cls_mask, probs, logits)


def prepare_params(params, dim_cls, dim_reg):
    """One-time conversion: (out,in)->(in,out) transpose, head fusion+pad, bf16 cast."""
    (w1, b1, w2, b2, wc0, bc0, wc1, bc1, wc2, bc2, wr, br) = params
    F_, D = w1.shape
    C, R = dim_cls, dim_reg
    assert 3 * C + R <= HEAD_PAD

    wh = jnp.concatenate([wc0.T, wc1.T, wc2.T, wr.T], axis=1)       # (D, 3C+R)
    wh = jnp.pad(wh, ((0, 0), (0, HEAD_PAD - (3 * C + R))))
    bh = jnp.concatenate([bc0, bc1, bc2, br])
    bh = jnp.pad(bh, (0, HEAD_PAD - (3 * C + R)))

    return dict(
        w1=w1.T.astype(jnp.bfloat16), b1=b1.reshape(1, F_).astype(jnp.float32),
        w2=w2.T.astype(jnp.bfloat16), b2=b2.reshape(1, D).astype(jnp.float32),
        wh=wh.astype(jnp.bfloat16), bh=bh.reshape(1, HEAD_PAD).astype(jnp.float32),
        dim_cls=C, dim_reg=R,
    )


def behavior_classifier(x, prep, *, tm=256):
    """x: (B, S, dim_model) with S == 1.  Returns (cls0, cls1, cls2, reg)."""
    B, S, D = x.shape
    assert S == 1, "forward uses .squeeze(1); seq length must be 1"
    M = B * S
    C, R = prep["dim_cls"], prep["dim_reg"]

    # Row tiling: multiple of 8 sublanes; TM rows per grid step for large batches.
    if M <= tm:
        TM = max(8, ((M + 7) // 8) * 8)
        M_pad = TM
    else:
        TM = tm
        M_pad = pl.cdiv(M, TM) * TM

    x2d = x.reshape(M, D).astype(jnp.bfloat16)
    if M_pad != M:
        x2d = jnp.pad(x2d, ((0, M_pad - M), (0, 0)))

    kernel = functools.partial(_behavior_classifier_kernel, dim_cls=C)
    resident = lambda a: pl.BlockSpec(a.shape, lambda i: (0,) * a.ndim)

    out = pl.pallas_call(
        kernel,
        out_shape=jax.ShapeDtypeStruct((M_pad, HEAD_PAD), jnp.float32),
        grid=(M_pad // TM,),
        in_specs=[
            pl.BlockSpec((TM, D), lambda i: (i, 0)),      # x row tile (pipelined)
            resident(prep["w1"]), resident(prep["b1"]),   # weights stay VMEM-resident
            resident(prep["w2"]), resident(prep["b2"]),
            resident(prep["wh"]), resident(prep["bh"]),
        ],
        out_specs=pl.BlockSpec((TM, HEAD_PAD), lambda i: (i, 0)),
        compiler_params=pltpu.CompilerParams(
            dimension_semantics=("parallel",),            # megacore sharding on v7x
            vmem_limit_bytes=32 * 1024 * 1024,            # safe on v7x's 64 MiB VMEM
        ),
    )(x2d, prep["w1"], prep["b1"], prep["w2"], prep["b2"], prep["wh"], prep["bh"])

    cls0 = out[:M, 0:C].reshape(B, C)
    cls1 = out[:M, C:2 * C].reshape(B, C)
    cls2 = out[:M, 2 * C:3 * C].reshape(B, C)
    reg = out[:M, 3 * C:3 * C + R].reshape(B, S, R)
    return cls0, cls1, cls2, reg


def init_params(key, dim_model, dim_ff, dim_cls, dim_reg):
    """Deterministic synthetic params matching nn.Linear shapes (out, in)."""
    keys = jax.random.split(key, 12)

    def lin(kw, kb, out_dim, in_dim):
        bound = 1.0 / jnp.sqrt(in_dim)
        w = jax.random.uniform(kw, (out_dim, in_dim), jnp.float32, -bound, bound)
        b = jax.random.uniform(kb, (out_dim,), jnp.float32, -bound, bound)
        return w, b

    w1, b1 = lin(keys[0], keys[1], dim_ff, dim_model)
    w2, b2 = lin(keys[2], keys[3], dim_model, dim_ff)
    wc0, bc0 = lin(keys[4], keys[5], dim_cls, dim_model)
    wc1, bc1 = lin(keys[6], keys[7], dim_cls, dim_model)
    wc2, bc2 = lin(keys[8], keys[9], dim_cls, dim_model)
    wr, br = lin(keys[10], keys[11], dim_reg, dim_model)
    return (w1, b1, w2, b2, wc0, bc0, wc1, bc1, wc2, bc2, wr, br)


def reference(x, params):
    (w1, b1, w2, b2, wc0, bc0, wc1, bc1, wc2, bc2, wr, br) = params
    h = jax.nn.relu(x @ w1.T + b1)
    y = h @ w2.T + b2
    sm = lambda w, b: jax.nn.softmax(y @ w.T + b, axis=-1)
    return (
        sm(wc0, bc0).squeeze(1),
        sm(wc1, bc1).squeeze(1),
        sm(wc2, bc2).squeeze(1),
        y @ wr.T + br,
    )


if __name__ == "__main__":
    dim_model, dim_ff, dim_cls, dim_reg = 32, 64, 8, 4
    B, S = 2, 1

    key = jax.random.PRNGKey(0)
    kx, kp = jax.random.split(key)
    x = jax.random.normal(kx, (B, S, dim_model), jnp.float32)
    params = init_params(kp, dim_model, dim_ff, dim_cls, dim_reg)
    prep = prepare_params(params, dim_cls, dim_reg)

    outs = behavior_classifier(x, prep)
    outs = jax.block_until_ready(outs)

    refs = reference(x, params)
    # bf16 weights/activations + approx reciprocal -> loosened tolerance vs f32 reference.
    for o, r in zip(outs, refs):
        assert o.shape == r.shape, (o.shape, r.shape)
        assert jnp.allclose(o, r, atol=3e-2, rtol=3e-2), jnp.max(jnp.abs(o - r))
    # softmax heads must sum to ~1
    for o in outs[:3]:
        assert jnp.allclose(jnp.sum(o, axis=-1), 1.0, atol=5e-3)

    print("KERNEL_OK")
</pallas_src>

<mosaic_0001>
module attributes {stable_mosaic.version = 11 : i64} {
  func.func @_behavior_classifier_kernel(%arg0: i32, %arg1: memref<8x32xbf16, #tpu.memory_space<vmem>>, %arg2: memref<32x64xbf16, #tpu.memory_space<vmem>>, %arg3: memref<1x64xf32, #tpu.memory_space<vmem>>, %arg4: memref<64x32xbf16, #tpu.memory_space<vmem>>, %arg5: memref<1x32xf32, #tpu.memory_space<vmem>>, %arg6: memref<32x128xbf16, #tpu.memory_space<vmem>>, %arg7: memref<1x128xf32, #tpu.memory_space<vmem>>, %arg8: memref<8x128xf32, #tpu.memory_space<vmem>>) attributes {dimension_semantics = [#tpu.dimension_semantics<parallel>], iteration_bounds = array<i64: 1>, scalar_prefetch = 0 : i64, scratch_operands = 0 : i64, tpu.core_type = #tpu.core_type<tc>, window_params = [{transform_indices = @transform_0, window_bounds = array<i64: 8, 32>}, {pipeline_mode = #tpu.pipeline_mode<synchronous>, transform_indices = @transform_1, window_bounds = array<i64: 32, 64>}, {pipeline_mode = #tpu.pipeline_mode<synchronous>, transform_indices = @transform_2, window_bounds = array<i64: 1, 64>}, {pipeline_mode = #tpu.pipeline_mode<synchronous>, transform_indices = @transform_3, window_bounds = array<i64: 64, 32>}, {pipeline_mode = #tpu.pipeline_mode<synchronous>, transform_indices = @transform_4, window_bounds = array<i64: 1, 32>}, {pipeline_mode = #tpu.pipeline_mode<synchronous>, transform_indices = @transform_5, window_bounds = array<i64: 32, 128>}, {pipeline_mode = #tpu.pipeline_mode<synchronous>, transform_indices = @transform_6, window_bounds = array<i64: 1, 128>}, {transform_indices = @transform_7, window_bounds = array<i64: 8, 128>}]} {
    %c0 = arith.constant 0 : index
    %c0_0 = arith.constant 0 : index
    %0 = vector.load %arg1[%c0, %c0_0] : memref<8x32xbf16, #tpu.memory_space<vmem>>, vector<8x32xbf16>
    %c0_1 = arith.constant 0 : index
    %c0_2 = arith.constant 0 : index
    %1 = vector.load %arg2[%c0_1, %c0_2] : memref<32x64xbf16, #tpu.memory_space<vmem>>, vector<32x64xbf16>
    %cst = arith.constant dense<0.000000e+00> : vector<8x64xf32>
    %2 = tpu.matmul %0, %1, %cst {dimension_numbers = #tpu.dot_dimension_numbers<[1], [0], [0], [1], [0, 0, 1, 1], [], []>} : vector<8x32xbf16>, vector<32x64xbf16>, vector<8x64xf32> -> vector<8x64xf32>
    %c0_3 = arith.constant 0 : index
    %c0_4 = arith.constant 0 : index
    %3 = vector.load %arg3[%c0_3, %c0_4] : memref<1x64xf32, #tpu.memory_space<vmem>>, vector<1x64xf32>
    %4 = vector.broadcast %3 : vector<1x64xf32> to vector<8x64xf32>
    %5 = arith.addf %2, %4 : vector<8x64xf32>
    %cst_5 = arith.constant 0.000000e+00 : f32
    %6 = vector.broadcast %cst_5 : f32 to vector<8x64xf32>
    %7 = arith.maximumf %5, %6 : vector<8x64xf32>
    %8 = arith.truncf %7 : vector<8x64xf32> to vector<8x64xbf16>
    %c0_6 = arith.constant 0 : index
    %c0_7 = arith.constant 0 : index
    %9 = vector.load %arg4[%c0_6, %c0_7] : memref<64x32xbf16, #tpu.memory_space<vmem>>, vector<64x32xbf16>
    %cst_8 = arith.constant dense<0.000000e+00> : vector<8x32xf32>
    %10 = tpu.matmul %8, %9, %cst_8 {dimension_numbers = #tpu.dot_dimension_numbers<[1], [0], [0], [1], [0, 0, 1, 1], [], []>} : vector<8x64xbf16>, vector<64x32xbf16>, vector<8x32xf32> -> vector<8x32xf32>
    %c0_9 = arith.constant 0 : index
    %c0_10 = arith.constant 0 : index
    %11 = vector.load %arg5[%c0_9, %c0_10] : memref<1x32xf32, #tpu.memory_space<vmem>>, vector<1x32xf32>
    %12 = vector.broadcast %11 : vector<1x32xf32> to vector<8x32xf32>
    %13 = arith.addf %10, %12 : vector<8x32xf32>
    %14 = arith.truncf %13 : vector<8x32xf32> to vector<8x32xbf16>
    %c0_11 = arith.constant 0 : index
    %c0_12 = arith.constant 0 : index
    %15 = vector.load %arg6[%c0_11, %c0_12] : memref<32x128xbf16, #tpu.memory_space<vmem>>, vector<32x128xbf16>
    %cst_13 = arith.constant dense<0.000000e+00> : vector<8x128xf32>
    %16 = tpu.matmul %14, %15, %cst_13 {dimension_numbers = #tpu.dot_dimension_numbers<[1], [0], [0], [1], [0, 0, 1, 1], [], []>} : vector<8x32xbf16>, vector<32x128xbf16>, vector<8x128xf32> -> vector<8x128xf32>
    %c0_14 = arith.constant 0 : index
    %c0_15 = arith.constant 0 : index
    %17 = vector.load %arg7[%c0_14, %c0_15] : memref<1x128xf32, #tpu.memory_space<vmem>>, vector<1x128xf32>
    %18 = vector.broadcast %17 : vector<1x128xf32> to vector<8x128xf32>
    %19 = arith.addf %16, %18 : vector<8x128xf32>
    %20 = tpu.iota {dimensions = array<i32: 1>} : vector<1x128xi32>
    %c0_i32 = arith.constant 0 : i32
    %21 = vector.broadcast %c0_i32 : i32 to vector<1x128xi32>
    %22 = arith.cmpi sge, %20, %21 : vector<1x128xi32>
    %c8_i32 = arith.constant 8 : i32
    %23 = vector.broadcast %c8_i32 : i32 to vector<1x128xi32>
    %24 = arith.cmpi slt, %20, %23 : vector<1x128xi32>
    %25 = arith.andi %22, %24 : vector<1x128xi1>
    %c8_i32_16 = arith.constant 8 : i32
    %26 = vector.broadcast %c8_i32_16 : i32 to vector<1x128xi32>
    %27 = arith.cmpi sge, %20, %26 : vector<1x128xi32>
    %c16_i32 = arith.constant 16 : i32
    %28 = vector.broadcast %c16_i32 : i32 to vector<1x128xi32>
    %29 = arith.cmpi slt, %20, %28 : vector<1x128xi32>
    %30 = arith.andi %27, %29 : vector<1x128xi1>
    %c16_i32_17 = arith.constant 16 : i32
    %31 = vector.broadcast %c16_i32_17 : i32 to vector<1x128xi32>
    %32 = arith.cmpi sge, %20, %31 : vector<1x128xi32>
    %c24_i32 = arith.constant 24 : i32
    %33 = vector.broadcast %c24_i32 : i32 to vector<1x128xi32>
    %34 = arith.cmpi slt, %20, %33 : vector<1x128xi32>
    %35 = arith.andi %32, %34 : vector<1x128xi1>
    %c24_i32_18 = arith.constant 24 : i32
    %36 = vector.broadcast %c24_i32_18 : i32 to vector<1x128xi32>
    %37 = arith.cmpi slt, %20, %36 : vector<1x128xi32>
    %cst_19 = arith.constant 0.000000e+00 : f32
    %38 = vector.broadcast %cst_19 : f32 to vector<8x128xf32>
    %cst_20 = arith.constant -1.000000e+30 : f32
    %39 = vector.shape_cast %25 : vector<1x128xi1> to vector<1x128xi1>
    %40 = vector.broadcast %39 : vector<1x128xi1> to vector<8x128xi1>
    %41 = vector.broadcast %cst_20 : f32 to vector<8x128xf32>
    %42 = arith.select %40, %19, %41 : vector<8x128xi1>, vector<8x128xf32>
    %cst_21 = arith.constant dense<0xFF800000> : vector<8xf32>
    %43 = vector.multi_reduction <maximumf>, %42, %cst_21 [1] : vector<8x128xf32> to vector<8xf32>
    %44 = vector.shape_cast %43 : vector<8xf32> to vector<8x1xf32>
    %45 = vector.shape_cast %25 : vector<1x128xi1> to vector<1x128xi1>
    %46 = vector.broadcast %45 : vector<1x128xi1> to vector<8x128xi1>
    %47 = vector.shape_cast %44 : vector<8x1xf32> to vector<8x1xf32>
    %48 = vector.broadcast %47 : vector<8x1xf32> to vector<8x128xf32>
    %49 = arith.select %46, %48, %38 : vector<8x128xi1>, vector<8x128xf32>
    %cst_22 = arith.constant -1.000000e+30 : f32
    %50 = vector.shape_cast %30 : vector<1x128xi1> to vector<1x128xi1>
    %51 = vector.broadcast %50 : vector<1x128xi1> to vector<8x128xi1>
    %52 = vector.broadcast %cst_22 : f32 to vector<8x128xf32>
    %53 = arith.select %51, %19, %52 : vector<8x128xi1>, vector<8x128xf32>
    %cst_23 = arith.constant dense<0xFF800000> : vector<8xf32>
    %54 = vector.multi_reduction <maximumf>, %53, %cst_23 [1] : vector<8x128xf32> to vector<8xf32>
    %55 = vector.shape_cast %54 : vector<8xf32> to vector<8x1xf32>
    %56 = vector.shape_cast %30 : vector<1x128xi1> to vector<1x128xi1>
    %57 = vector.broadcast %56 : vector<1x128xi1> to vector<8x128xi1>
    %58 = vector.shape_cast %55 : vector<8x1xf32> to vector<8x1xf32>
    %59 = vector.broadcast %58 : vector<8x1xf32> to vector<8x128xf32>
    %60 = arith.select %57, %59, %49 : vector<8x128xi1>, vector<8x128xf32>
    %cst_24 = arith.constant -1.000000e+30 : f32
    %61 = vector.shape_cast %35 : vector<1x128xi1> to vector<1x128xi1>
    %62 = vector.broadcast %61 : vector<1x128xi1> to vector<8x128xi1>
    %63 = vector.broadcast %cst_24 : f32 to vector<8x128xf32>
    %64 = arith.select %62, %19, %63 : vector<8x128xi1>, vector<8x128xf32>
    %cst_25 = arith.constant dense<0xFF800000> : vector<8xf32>
    %65 = vector.multi_reduction <maximumf>, %64, %cst_25 [1] : vector<8x128xf32> to vector<8xf32>
    %66 = vector.shape_cast %65 : vector<8xf32> to vector<8x1xf32>
    %67 = vector.shape_cast %35 : vector<1x128xi1> to vector<1x128xi1>
    %68 = vector.broadcast %67 : vector<1x128xi1> to vector<8x128xi1>
    %69 = vector.shape_cast %66 : vector<8x1xf32> to vector<8x1xf32>
    %70 = vector.broadcast %69 : vector<8x1xf32> to vector<8x128xf32>
    %71 = arith.select %68, %70, %60 : vector<8x128xi1>, vector<8x128xf32>
    %72 = arith.subf %19, %71 : vector<8x128xf32>
    %73 = math.exp %72 : vector<8x128xf32>
    %cst_26 = arith.constant 0.000000e+00 : f32
    %74 = vector.shape_cast %37 : vector<1x128xi1> to vector<1x128xi1>
    %75 = vector.broadcast %74 : vector<1x128xi1> to vector<8x128xi1>
    %76 = vector.broadcast %cst_26 : f32 to vector<8x128xf32>
    %77 = arith.select %75, %73, %76 : vector<8x128xi1>, vector<8x128xf32>
    %cst_27 = arith.constant 1.000000e+00 : f32
    %78 = vector.broadcast %cst_27 : f32 to vector<8x128xf32>
    %cst_28 = arith.constant 0.000000e+00 : f32
    %79 = vector.shape_cast %25 : vector<1x128xi1> to vector<1x128xi1>
    %80 = vector.broadcast %79 : vector<1x128xi1> to vector<8x128xi1>
    %81 = vector.broadcast %cst_28 : f32 to vector<8x128xf32>
    %82 = arith.select %80, %77, %81 : vector<8x128xi1>, vector<8x128xf32>
    %cst_29 = arith.constant dense<0.000000e+00> : vector<8xf32>
    %83 = vector.multi_reduction <add>, %82, %cst_29 [1] : vector<8x128xf32> to vector<8xf32>
    %84 = vector.shape_cast %83 : vector<8xf32> to vector<8x1xf32>
    %85 = vector.shape_cast %25 : vector<1x128xi1> to vector<1x128xi1>
    %86 = vector.broadcast %85 : vector<1x128xi1> to vector<8x128xi1>
    %87 = vector.shape_cast %84 : vector<8x1xf32> to vector<8x1xf32>
    %88 = vector.broadcast %87 : vector<8x1xf32> to vector<8x128xf32>
    %89 = arith.select %86, %88, %78 : vector<8x128xi1>, vector<8x128xf32>
    %cst_30 = arith.constant 0.000000e+00 : f32
    %90 = vector.shape_cast %30 : vector<1x128xi1> to vector<1x128xi1>
    %91 = vector.broadcast %90 : vector<1x128xi1> to vector<8x128xi1>
    %92 = vector.broadcast %cst_30 : f32 to vector<8x128xf32>
    %93 = arith.select %91, %77, %92 : vector<8x128xi1>, vector<8x128xf32>
    %cst_31 = arith.constant dense<0.000000e+00> : vector<8xf32>
    %94 = vector.multi_reduction <add>, %93, %cst_31 [1] : vector<8x128xf32> to vector<8xf32>
    %95 = vector.shape_cast %94 : vector<8xf32> to vector<8x1xf32>
    %96 = vector.shape_cast %30 : vector<1x128xi1> to vector<1x128xi1>
    %97 = vector.broadcast %96 : vector<1x128xi1> to vector<8x128xi1>
    %98 = vector.shape_cast %95 : vector<8x1xf32> to vector<8x1xf32>
    %99 = vector.broadcast %98 : vector<8x1xf32> to vector<8x128xf32>
    %100 = arith.select %97, %99, %89 : vector<8x128xi1>, vector<8x128xf32>
    %cst_32 = arith.constant 0.000000e+00 : f32
    %101 = vector.shape_cast %35 : vector<1x128xi1> to vector<1x128xi1>
    %102 = vector.broadcast %101 : vector<1x128xi1> to vector<8x128xi1>
    %103 = vector.broadcast %cst_32 : f32 to vector<8x128xf32>
    %104 = arith.select %102, %77, %103 : vector<8x128xi1>, vector<8x128xf32>
    %cst_33 = arith.constant dense<0.000000e+00> : vector<8xf32>
    %105 = vector.multi_reduction <add>, %104, %cst_33 [1] : vector<8x128xf32> to vector<8xf32>
    %106 = vector.shape_cast %105 : vector<8xf32> to vector<8x1xf32>
    %107 = vector.shape_cast %35 : vector<1x128xi1> to vector<1x128xi1>
    %108 = vector.broadcast %107 : vector<1x128xi1> to vector<8x128xi1>
    %109 = vector.shape_cast %106 : vector<8x1xf32> to vector<8x1xf32>
    %110 = vector.broadcast %109 : vector<8x1xf32> to vector<8x128xf32>
    %111 = arith.select %108, %110, %100 : vector<8x128xi1>, vector<8x128xf32>
    %112 = tpu.reciprocal %111 {approx = true} : vector<8x128xf32> -> vector<8x128xf32>
    %113 = arith.mulf %77, %112 : vector<8x128xf32>
    %114 = vector.shape_cast %37 : vector<1x128xi1> to vector<1x128xi1>
    %115 = vector.broadcast %114 : vector<1x128xi1> to vector<8x128xi1>
    %116 = arith.select %115, %113, %19 : vector<8x128xi1>, vector<8x128xf32>
    %c0_34 = arith.constant 0 : index
    %c0_35 = arith.constant 0 : index
    %117 = vector.load %arg8[%c0_34, %c0_35] : memref<8x128xf32, #tpu.memory_space<vmem>>, vector<8x128xf32>
    tpu.vector_store %arg8[%c0_34, %c0_35], %116 {strides = array<i32>} : memref<8x128xf32, #tpu.memory_space<vmem>>, vector<8x128xf32>,
    return
  }
  func.func @transform_0(%arg0: i32) -> (i32, i32) {
    %c0_i32 = arith.constant 0 : i32
    %c0_i32_0 = arith.constant 0 : i32
    return %arg0, %c0_i32 : i32, i32
  }
  func.func @transform_1(%arg0: i32) -> (i32, i32) {
    %c0_i32 = arith.constant 0 : i32
    %c0_i32_0 = arith.constant 0 : i32
    %c0_i32_1 = arith.constant 0 : i32
    return %c0_i32, %c0_i32_0 : i32, i32
  }
  func.func @transform_2(%arg0: i32) -> (i32, i32) {
    %c0_i32 = arith.constant 0 : i32
    %c0_i32_0 = arith.constant 0 : i32
    %c0_i32_1 = arith.constant 0 : i32
    return %c0_i32, %c0_i32_0 : i32, i32
  }
  func.func @transform_3(%arg0: i32) -> (i32, i32) {
    %c0_i32 = arith.constant 0 : i32
    %c0_i32_0 = arith.constant 0 : i32
    %c0_i32_1 = arith.constant 0 : i32
    return %c0_i32, %c0_i32_0 : i32, i32
  }
  func.func @transform_4(%arg0: i32) -> (i32, i32) {
    %c0_i32 = arith.constant 0 : i32
    %c0_i32_0 = arith.constant 0 : i32
    %c0_i32_1 = arith.constant 0 : i32
    return %c0_i32, %c0_i32_0 : i32, i32
  }
  func.func @transform_5(%arg0: i32) -> (i32, i32) {
    %c0_i32 = arith.constant 0 : i32
    %c0_i32_0 = arith.constant 0 : i32
    %c0_i32_1 = arith.constant 0 : i32
    return %c0_i32, %c0_i32_0 : i32, i32
  }
  func.func @transform_6(%arg0: i32) -> (i32, i32) {
    %c0_i32 = arith.constant 0 : i32
    %c0_i32_0 = arith.constant 0 : i32
    %c0_i32_1 = arith.constant 0 : i32
    return %c0_i32, %c0_i32_0 : i32, i32
  }
  func.func @transform_7(%arg0: i32) -> (i32, i32) {
    %c0_i32 = arith.constant 0 : i32
    %c0_i32_0 = arith.constant 0 : i32
    return %arg0, %c0_i32 : i32, i32
  }
}

</mosaic_0001>

<llo_original>
// kernel: tpu_custom_call.1
$region0: #{tpu_custom_call.1}
  #allocation0 [shape = 'u32[]', space=smem, size = 0x4, offset = 0x4, fixed_abs, tag = 'smem constant byte address 0x4 - core index']
  #allocation1 [shape = 'u32[72,128]{1,0:T(1,128)}', space=vmem, size = 0x9000, scoped, tag = 'internal scratch']
  %s0 = inlined_call_operand.vmem [shape: bf16[8,32], index: 0, kind: input, shape index: {}]
  %s1 = inlined_call_operand.vmem [shape: bf16[32,64], index: 1, kind: input, shape index: {}]
  %s2 = inlined_call_operand.vmem [shape: f32[1,64], index: 2, kind: input, shape index: {}]
  %s3 = inlined_call_operand.vmem [shape: bf16[64,32], index: 3, kind: input, shape index: {}]
  %s4 = inlined_call_operand.vmem [shape: f32[1,32], index: 4, kind: input, shape index: {}]
  %s5 = inlined_call_operand.vmem [shape: bf16[32,128], index: 5, kind: input, shape index: {}]
  %s6 = inlined_call_operand.vmem [shape: f32[1,128], index: 6, kind: input, shape index: {}]
  %s7 = inlined_call_operand.hbm [shape: f32[8,128], index: 7, kind: output, shape index: {}]
  %s8 = sld [smem:[#allocation0]]
  $region38: #{tpu_custom_call.1} parent=0
    _
  %s10 = ssub.s32 1, %s8
  %s11 = scalar_select 0, %s10, %s8
  $region1: #{tpu_custom_call.1} parent=0
    #allocation2 [shape = 'u8[4096]{0}', space=vmem, size = 0x1000, scoped, tag = 'output window, operand 0, single buffered']
    #allocation3 [shape = 's32[1]{0}', space=sflag, size = 0x4, scoped, tag = 'scoped memory for tpu_custom_call.1']
    %12 = vsyncpa [#allocation3], 0
    // Predicated region
    $region2: #{tpu_custom_call.1} parent=1 // pred_check
      _
    $region3: #{tpu_custom_call.1} parent=1 // pred_check_branch
      %14 = sbr.rel (0) target = $region5
    $region4: #{tpu_custom_call.1} parent=1 // pred_region
      _
    $region5: #{tpu_custom_call.1} parent=1 // pred_fallthru
      _
    // Predicated region
    $region6: #{tpu_custom_call.1} parent=1 // pred_check
      _
    $region7: #{tpu_custom_call.1} parent=1 // pred_check_branch
      %16 = sbr.rel (0) target = $region9
    $region8: #{tpu_custom_call.1} parent=1 // pred_region
      _
    $region9: #{tpu_custom_call.1} parent=1 // pred_fallthru
      _
    // Predicated region
    $region10: #{tpu_custom_call.1} parent=1 // pred_check
      _
    $region11: #{tpu_custom_call.1} parent=1 // pred_check_branch
      %18 = sbr.rel (0) target = $region13
    $region12: #{tpu_custom_call.1} parent=1 // pred_region
      _
    $region13: #{tpu_custom_call.1} parent=1 // pred_fallthru
      _
    // Predicated region
    $region14: #{tpu_custom_call.1} parent=1 // pred_check
      _
    $region15: #{tpu_custom_call.1} parent=1 // pred_check_branch
      %20 = sbr.rel (0) target = $region17
    $region16: #{tpu_custom_call.1} parent=1 // pred_region
      _
    $region17: #{tpu_custom_call.1} parent=1 // pred_fallthru
      _
    // Predicated region
    $region18: #{tpu_custom_call.1} parent=1 // pred_check
      _
    $region19: #{tpu_custom_call.1} parent=1 // pred_check_branch
      %22 = sbr.rel (0) target = $region21
    $region20: #{tpu_custom_call.1} parent=1 // pred_region
      _
    $region21: #{tpu_custom_call.1} parent=1 // pred_fallthru
      _
    // Predicated region
    $region22: #{tpu_custom_call.1} parent=1 // pred_check
      _
    $region23: #{tpu_custom_call.1} parent=1 // pred_check_branch
      %24 = sbr.rel (0) target = $region25
    $region24: #{tpu_custom_call.1} parent=1 // pred_region
      _
    $region25: #{tpu_custom_call.1} parent=1 // pred_fallthru
      _
    // Predicated region
    $region26: #{tpu_custom_call.1} parent=1 // pred_check
      _
    $region27: #{tpu_custom_call.1} parent=1 // pred_check_branch
      %26 = sbr.rel (0) target = $region29
    $region28: #{tpu_custom_call.1} parent=1 // pred_region
      _
    $region29: #{tpu_custom_call.1} parent=1 // pred_fallthru
      _
    %v28 = vld [vmem:[%s0] sm:$0xf]
    %v29 = vld [vmem:[%s1] sm:$0xf]
    %v30 = vld [vmem:[%s1 + $0x4] sm:$0xf]
    %v31 = vld [vmem:[%s1 + $0x8] sm:$0xf]
    %v32 = vld [vmem:[%s1 + $0xc] sm:$0xf]
    %v33 = vld [vmem:[%s2] sm:$0x1]
    %v35 = vperm.slane %v33, 0
    %v41 = vunpack.c.l.b16 %v29
    %v42 = vunpack.c.l.b16 %v30
    %v43 = vunpack.c.l.b16 %v31
    %v44 = vunpack.c.l.b16 %v32
    %v45 = vpack.c.b16 %v42, %v41
    %v46 = vpack.c.b16 %v44, %v43
    %vm49 = vcmask 261120
    %v51 = vsel %vm49, %v28, 0
    %53 = vmatpush.bf16.msra.mxu0 0
    %54 = vmatpush.bf16.msra.mxu0 0
    %55 = vmatpush.bf16.msra.mxu0 0
    %56 = vmatpush.bf16.msra.mxu0 0
    %57 = vmatpush.bf16.msra.mxu0 0
    %58 = vmatpush.bf16.msra.mxu0 0
    %59 = vmatpush.bf16.msra.mxu0 %v46
    %60 = vmatpush.bf16.msra.mxu0 %v45
    %61 = vmatmul.bf16.gmra.mxu0 %v51
    %v62 = vpop.f32.mrf.mxu0
    %v63 = vadd.f32 %v35, %v62
    %v64 = vpop.f32.mrf.mxu0
    %65 = vdwg.mxu0
    %v66 = vmax.f32 %v63, 0.0
    %v67 = vpack.c.bf16 %v66, %v66
    %v68 = vld [vmem:[%s3] sm:$0xf]
    %v69 = vld [vmem:[%s3 + $0x4] sm:$0xf]
    %v70 = vld [vmem:[%s3 + $0x8] sm:$0xf]
    %v71 = vld [vmem:[%s3 + $0xc] sm:$0xf]
    %v72 = vld [vmem:[%s3 + $0x10] sm:$0xf]
    %v73 = vld [vmem:[%s3 + $0x14] sm:$0xf]
    %v74 = vld [vmem:[%s3 + $0x18] sm:$0xf]
    %v75 = vld [vmem:[%s3 + $0x1c] sm:$0xf]
    %v76 = vld [vmem:[%s4] sm:$0x1]
    %v78 = vperm.slane %v76, 0
    %v88 = vunpack.c.l.b16 %v68
    %v89 = vunpack.c.l.b16 %v69
    %v90 = vunpack.c.l.b16 %v70
    %v91 = vunpack.c.l.b16 %v71
    %v92 = vunpack.c.l.b16 %v72
    %v93 = vunpack.c.l.b16 %v73
    %v94 = vunpack.c.l.b16 %v74
    %v95 = vunpack.c.l.b16 %v75
    %v96 = vpack.c.b16 %v89, %v88
    %v97 = vpack.c.b16 %v91, %v90
    %v98 = vpack.c.b16 %v93, %v92
    %v99 = vpack.c.b16 %v95, %v94
    %vm104 = vcmask 523264
    %v106 = vsel %vm104, %v67, 0
    %108 = vmatpush.bf16.msra.mxu0 0
    %109 = vmatpush.bf16.msra.mxu0 0
    %110 = vmatpush.bf16.msra.mxu0 0
    %111 = vmatpush.bf16.msra.mxu0 0
    %112 = vmatpush.bf16.msra.mxu0 %v99
    %113 = vmatpush.bf16.msra.mxu0 %v98
    %114 = vmatpush.bf16.msra.mxu0 %v97
    %115 = vmatpush.bf16.msra.mxu0 %v96
    %116 = vmatmul.bf16.gmra.mxu0 %v106
    %v117 = vpop.f32.mrf.mxu0
    %v118 = vadd.f32 %v78, %v117
    %v119 = vpop.f32.mrf.mxu0
    %120 = vdwg.mxu0
    %v121 = vpack.c.bf16 %v118, %v118
    %v122 = vld [vmem:[%s5] sm:$0xf]
    %v123 = vld [vmem:[%s5 + $0x4] sm:$0xf]
    %v124 = vld [vmem:[%s5 + $0x8] sm:$0xf]
    %v125 = vld [vmem:[%s5 + $0xc] sm:$0xf]
    %v126 = vld [vmem:[%s6] sm:$0x1]
    %v128 = vperm.slane %v126, 0
    %v134 = vunpack.c.l.b16 %v122
    %v135 = vunpack.c.l.b16 %v123
    %v136 = vunpack.c.l.b16 %v124
    %v137 = vunpack.c.l.b16 %v125
    %v138 = vpack.c.b16 %v135, %v134
    %v139 = vpack.c.b16 %v137, %v136
    %v143 = vsel %vm49, %v121, 0
    %145 = vmatpush.bf16.msra.mxu0 0
    %146 = vmatpush.bf16.msra.mxu0 0
    %147 = vmatpush.bf16.msra.mxu0 0
    %148 = vmatpush.bf16.msra.mxu0 0
    %149 = vmatpush.bf16.msra.mxu0 0
    %150 = vmatpush.bf16.msra.mxu0 0
    %151 = vmatpush.bf16.msra.mxu0 %v139
    %152 = vmatpush.bf16.msra.mxu0 %v138
    %153 = vmatmul.bf16.gmra.mxu0 %v143
    %v154 = vpop.f32.mrf.mxu0
    %v155 = vadd.f32 %v128, %v154
    %v156 = vpop.f32.mrf.mxu0
    %157 = vdwg.mxu0
    %v158 = vlaneseq
    %v159 = vand.u32 %v158, 127
    %vm160 = vcmp.ge.s32.totalorder %v159, 0
    %vm161 = vcmp.lt.s32.totalorder %v159, 8
    %vm162 = vmand %vm160, %vm161
    %vm163 = vcmp.ge.s32.totalorder %v159, 8
    %vm164 = vcmp.lt.s32.totalorder %v159, 16
    %vm165 = vmand %vm163, %vm164
    %vm166 = vcmp.ge.s32.totalorder %v159, 16
    %vm167 = vcmp.lt.s32.totalorder %v159, 24
    %vm168 = vmand %vm166, %vm167
    %v169 = vsel %vm162, 1, 0
    %vm170 = vcmp.eq.s32.totalorder %v169, 1
    %v171 = vsel %vm170, %v155, -1e+30
    %172 = vmax.xlane.f32.xlu0 %v171
    %v173 = vpop.xlane.xlu0 %172
    %v174 = vsel %vm170, %v173, 0.0
    %v175 = vsel %vm165, 1, 0
    %vm176 = vcmp.eq.s32.totalorder %v175, 1
    %v177 = vsel %vm176, %v155, -1e+30
    %178 = vmax.xlane.f32.xlu0 %v177
    %v179 = vpop.xlane.xlu0 %178
    %v180 = vsel %vm176, %v179, %v174
    %v181 = vsel %vm168, 1, 0
    %vm182 = vcmp.eq.s32.totalorder %v181, 1
    %v183 = vsel %vm182, %v155, -1e+30
    %184 = vmax.xlane.f32.xlu0 %v183
    %v185 = vpop.xlane.xlu0 %184
    %v186 = vsel %vm182, %v185, %v180
    %v187 = vsub.f32 %v155, %v186
    %v188 = vmul.f32 %v187, 1.442695
    %v189 = vpow.pop %v188
    %v190 = vsel %vm167, 1, 0
    %vm191 = vcmp.eq.s32.totalorder %v190, 1
    %v192 = vsel %vm191, %v189, 0.0
    %v193 = vsel %vm170, %v192, 0.0
    %194 = vadd.xlane.f32.xlu0 %v193
    %v195 = vpop.xlane.xlu0 %194
    %v196 = vsel %vm170, %v195, 1.0
    %v197 = vsel %vm176, %v192, 0.0
    %198 = vadd.xlane.f32.xlu0 %v197
    %v199 = vpop.xlane.xlu0 %198
    %v200 = vsel %vm176, %v199, %v196
    %v201 = vsel %vm182, %v192, 0.0
    %202 = vadd.xlane.f32.xlu0 %v201
    %v203 = vpop.xlane.xlu0 %202
    %v204 = vsel %vm182, %v203, %v200
    %v205 = vrcp.pop %v204
    %v206 = vmul.f32 %v192, %v205
    %v207 = vsel %vm191, %v206, %v155
    %208 = vst [vmem:[#allocation2] sm:$0xff] %v207
    // Predicated region
    $region30: #{tpu_custom_call.1} parent=1 // pred_check
      _
    $region31: #{tpu_custom_call.1} parent=1 // pred_check_branch
      %210 = sbr.rel (0) target = $region33
    $region32: #{tpu_custom_call.1} parent=1 // pred_region
      %212 = vsyncadd [#allocation3], 0
      %s214 = sshll.u32 [#allocation2], 4
      %s215 = int_to_ptr.vmem [resolvable:$true] %s214
      %s216 = sshll.u32 %s7, 4
      %s217 = int_to_ptr.hbm [resolvable:$true] %s216
      %219 = dma.vmem_to_hbm [thread:$0]  %s215, 128, %s217, [#allocation3]
    $region33: #{tpu_custom_call.1} parent=1 // pred_fallthru
      _
    // Predicated region
    $region34: #{tpu_custom_call.1} parent=1 // pred_check
      _
    $region35: #{tpu_custom_call.1} parent=1 // pred_check_branch
      %221 = sbr.rel (0) target = $region37
    $region36: #{tpu_custom_call.1} parent=1 // pred_region
      %223 = dma.done [#allocation3], 128
    $region37: #{tpu_custom_call.1} parent=1 // pred_fallthru
      _
    %224 = vsyncpa [#allocation3], 1

</llo_original>
